<compile_context>
chip_gen: v6e
topology: v6e:2x2x1
jax: 0.10.0
libtpu: 0.0.40
codegen_flags: <defaults>
</compile_context>

<pallas_src>
import math
from functools import partial

import jax
import jax.numpy as jnp
from jax.experimental import pallas as pl
from jax.experimental.pallas import tpu as pltpu


# --------------------------- row-tiled dense layer ---------------------------

def _linear_kernel(x_ref, w_ref, b_ref, o_ref):
    o_ref[...] = (
        jnp.dot(x_ref[...], w_ref[...], preferred_element_type=jnp.float32)
        + b_ref[...]
    )


def linear(x, w, b, *, block_rows=256):
    """x: (N, Din) @ w: (Din, Dout) + b: (Dout,) -> (N, Dout), row-tiled on the MXU."""
    N, Din = x.shape
    Dout = w.shape[1]
    tm = N if N <= block_rows else block_rows          # full rows for small N
    return pl.pallas_call(
        _linear_kernel,
        out_shape=jax.ShapeDtypeStruct((N, Dout), jnp.float32),
        grid=(pl.cdiv(N, tm),),
        in_specs=[
            pl.BlockSpec((tm, Din), lambda i: (i, 0)),
            pl.BlockSpec((Din, Dout), lambda i: (0, 0)),
            pl.BlockSpec((1, Dout), lambda i: (0, 0)),
        ],
        out_specs=pl.BlockSpec((tm, Dout), lambda i: (i, 0)),
        compiler_params=pltpu.CompilerParams(dimension_semantics=("parallel",)),
    )(x, w, b.reshape(1, Dout))


# ----------------------- fused rel-pos attention kernel ----------------------

def _relative_shift_tile(ps, sc_ref, row, col):
    """In-register Transformer-XL relative shift of one (T, T) positional-score tile.

    Equivalent to: prepend a zero column, view as (T+1, T), drop the first row.
    Realized as a per-row circular left-roll by (T-1-i) — a log2(T)-stage barrel
    shifter whose uniform rolls are offset loads from a lane-doubled VMEM scratch —
    followed by a one-row shift and iota-mask selects.  No HBM traffic.
    """
    T = ps.shape[0]
    x = ps
    if T > 1:
        amount = (T - 1) - row                        # per-row left-roll amount
        for bit in range((T - 1).bit_length()):
            s = 1 << bit
            sc_ref[:T, :T] = x                        # doubled copy: an offset load
            sc_ref[:T, T:2 * T] = x                   # realizes a circular roll by s
            rolled = sc_ref[:T, s:s + T]
            x = jnp.where((amount & s) != 0, rolled, x)
        sc_ref[:T, :T] = x
        x_next = sc_ref[1:T + 1, :T]                  # row i <- row i+1 of x
    else:
        x_next = x
    zero = jnp.zeros_like(x)
    #  j <= i  -> rolled row i ;  j == i+1 -> 0 ;  j >= i+2 -> rolled row i+1
    return jnp.where(col <= row, x, jnp.where(col == row + 1, zero, x_next))


def _fused_attention_kernel(qa_ref, k_ref, v_ref, p_ref, o_ref, shift_sc,
                            *, num_heads, scale):
    # qa_ref: (1, T+2, D) — rows [0:T] = projected query, row T = u_bias (per-head
    #         columns), row T+1 = v_bias.  k/v: (1, T, D).  p: (T, D).  o: (1, T, D).
    Tp2, D = qa_ref.shape[1], qa_ref.shape[2]
    T = Tp2 - 2
    dh = D // num_heads

    shift_sc[...] = jnp.zeros(shift_sc.shape, shift_sc.dtype)

    qa = qa_ref[0] * scale                # fold 1/sqrt(dim) into q, u, v (T*dh work)
    k = k_ref[0]                          # (T, D)
    v = v_ref[0]                          # (T, D)
    p = p_ref[...]                        # (T, D)  shared across batch (no broadcast)

    row = jax.lax.broadcasted_iota(jnp.int32, (T, T), 0)
    col = jax.lax.broadcasted_iota(jnp.int32, (T, T), 1)
    dn = (((1,), (1,)), ((), ()))         # contract d_head, RHS given row-major

    # Static per-head loop: static lane offsets, heads share the resident (T, D) tiles.
    for h in range(num_heads):
        lo = h * dh
        hi = lo + dh
        lhs = qa[:, lo:hi]                                        # (T+2, dh)
        kp = jnp.concatenate([k[:, lo:hi], p[:, lo:hi]], axis=0)  # (2T, dh)

        # Single MXU pass: [q ; u ; v] @ [K | P]^T  ->  (T+2, 2T)
        s = jax.lax.dot_general(lhs, kp, dn, preferred_element_type=jnp.float32)
        content = s[:T, :T] + s[T:T + 1, :T]          # + u@K^T as a broadcast row
        pos_raw = s[:T, T:] + s[T + 1:T + 2, T:]      # + v@P^T as a broadcast row

        pos_shift = _relative_shift_tile(pos_raw, shift_sc, row, col)
        score = content + pos_shift                   # already scaled by 1/sqrt(dim)
        # TODO(synk): optional boolean mask (masked_fill -1e9) not supported here.

        m = jnp.max(score, axis=-1, keepdims=True)
        e = jnp.exp(score - m)
        denom = jnp.sum(e, axis=-1, keepdims=True)
        inv = pl.reciprocal(denom, approx=True)       # EUP slot
        inv = inv * (2.0 - denom * inv)               # one Newton step -> ~fp32 exact
        attn = e * inv
        # TODO(synk): dropout on attn (p=0.1) omitted — eval-mode identity.

        ctx = jnp.dot(attn, v[:, lo:hi], preferred_element_type=jnp.float32)  # (T, dh)
        o_ref[0, :, lo:hi] = ctx                      # lane-dense (B, T, D) output


def fused_rel_pos_attention(q_aug, k_p, v_p, pos_p, num_heads, scale):
    B, Tp2, D = q_aug.shape
    T = Tp2 - 2
    kernel = partial(_fused_attention_kernel, num_heads=num_heads, scale=scale)
    return pl.pallas_call(
        kernel,
        out_shape=jax.ShapeDtypeStruct((B, T, D), jnp.float32),
        grid=(B,),
        in_specs=[
            pl.BlockSpec((1, T + 2, D), lambda b: (b, 0, 0)),   # q + bias rows
            pl.BlockSpec((1, T, D), lambda b: (b, 0, 0)),       # k
            pl.BlockSpec((1, T, D), lambda b: (b, 0, 0)),       # v
            pl.BlockSpec((T, D), lambda b: (0, 0)),             # pos (shared)
        ],
        out_specs=pl.BlockSpec((1, T, D), lambda b: (b, 0, 0)),
        scratch_shapes=[pltpu.VMEM((T + 1, 2 * T), jnp.float32)],
        compiler_params=pltpu.CompilerParams(dimension_semantics=("parallel",)),
    )(q_aug, k_p, v_p, pos_p)


# ------------------------------- JAX glue -----------------------------------

def positional_encoding(length, d_model):
    """Standard sinusoidal PE table, shape (length, d_model)."""
    position = jnp.arange(length, dtype=jnp.float32)[:, None]
    div_term = jnp.exp(
        jnp.arange(0, d_model, 2, dtype=jnp.float32)
        * (-math.log(10000.0) / d_model)
    )
    pe = jnp.zeros((length, d_model), jnp.float32)
    pe = pe.at[:, 0::2].set(jnp.sin(position * div_term))
    pe = pe.at[:, 1::2].set(jnp.cos(position * div_term))
    return pe


def mha_rel_pos_forward(params, query, key, value, mask=None):
    # TODO(synk): only mask=None is supported (the module's optional mask path).
    B, T, D = query.shape
    H = params["num_heads"]

    # Positional embedding + bias-free projection (computed once, shared over batch).
    pe = positional_encoding(T, D)                                       # (T, D)
    pos = linear(pe, params["w_pos"], jnp.zeros((D,), jnp.float32))      # (T, D)

    if query is key and key is value:
        # Self-attention fast path: one fused (D, 3D) QKV matmul.
        w_qkv = jnp.concatenate([params["w_q"], params["w_k"], params["w_v"]], axis=1)
        b_qkv = jnp.concatenate([params["b_q"], params["b_k"], params["b_v"]], axis=0)
        qkv = linear(query.reshape(B * T, D), w_qkv, b_qkv)              # (B*T, 3D)
        q_p = qkv[:, :D].reshape(B, T, D)
        k_p = qkv[:, D:2 * D].reshape(B, T, D)
        v_p = qkv[:, 2 * D:].reshape(B, T, D)
    else:
        # General (cross-attention) signature: weights cannot be concatenated,
        # but each projection is row-tiled and pipelined.
        q_p = linear(query.reshape(B * T, D), params["w_q"], params["b_q"]).reshape(B, T, D)
        k_p = linear(key.reshape(B * T, D), params["w_k"], params["b_k"]).reshape(B, T, D)
        v_p = linear(value.reshape(B * T, D), params["w_v"], params["b_v"]).reshape(B, T, D)

    # Append u/v biases as two extra query rows (per-head columns line up with the
    # per-head slices of D), so the kernel gets the rank-1 bias terms for free.
    u_row = jnp.broadcast_to(params["u_bias"].reshape(1, 1, D), (B, 1, D))
    v_row = jnp.broadcast_to(params["v_bias"].reshape(1, 1, D), (B, 1, D))
    q_aug = jnp.concatenate([q_p, u_row, v_row], axis=1)                 # (B, T+2, D)

    scale = 1.0 / math.sqrt(D)
    ctx = fused_rel_pos_attention(q_aug, k_p, v_p, pos, H, scale)        # (B, T, D)

    out = linear(ctx.reshape(B * T, D), params["w_out"], params["b_out"]).reshape(B, T, D)
    return out


# --------------------------- pure-JAX reference ------------------------------

def relative_shift(pos_score):
    b, h, t1, t2 = pos_score.shape
    zeros = jnp.zeros((b, h, t1, 1), pos_score.dtype)
    padded = jnp.concatenate([zeros, pos_score], axis=-1)
    padded = padded.reshape(b, h, t2 + 1, t1)
    return padded[:, :, 1:].reshape(b, h, t1, t2)


def reference_forward(params, query, key, value):
    B, T, D = query.shape
    H = params["num_heads"]
    dh = D // H
    pe = positional_encoding(T, D)
    pos = (pe @ params["w_pos"]).reshape(T, H, dh)
    pos = jnp.broadcast_to(pos[None], (B, T, H, dh))

    q = (query @ params["w_q"] + params["b_q"]).reshape(B, T, H, dh)
    k = (key @ params["w_k"] + params["b_k"]).reshape(B, T, H, dh).transpose(0, 2, 1, 3)
    v = (value @ params["w_v"] + params["b_v"]).reshape(B, T, H, dh).transpose(0, 2, 1, 3)

    content = jnp.matmul(
        jnp.transpose(q + params["u_bias"], (0, 2, 1, 3)),
        jnp.transpose(k, (0, 1, 3, 2)))
    pos_score = jnp.matmul(
        jnp.transpose(q + params["v_bias"], (0, 2, 1, 3)),
        jnp.transpose(pos, (0, 2, 3, 1)))
    pos_score = relative_shift(pos_score)
    score = (content + pos_score) / math.sqrt(D)
    attn = jax.nn.softmax(score, axis=-1)
    ctx = jnp.matmul(attn, v)
    ctx = jnp.transpose(ctx, (0, 2, 1, 3)).reshape(B, T, D)
    return ctx @ params["w_out"] + params["b_out"]


# ---------------------------------- main -------------------------------------

if __name__ == "__main__":
    B, T, D, H = 2, 8, 32, 4   # batch=2, seq=8, dim=32, heads=4 (d_head=8)
    root = jax.random.PRNGKey(0)
    ks = jax.random.split(root, 16)

    def init(k, shape, fan_in):
        return jax.random.normal(k, shape, jnp.float32) / math.sqrt(fan_in)

    params = {
        "num_heads": H,
        "w_q": init(ks[0], (D, D), D), "b_q": init(ks[1], (D,), D),
        "w_k": init(ks[2], (D, D), D), "b_k": init(ks[3], (D,), D),
        "w_v": init(ks[4], (D, D), D), "b_v": init(ks[5], (D,), D),
        "w_pos": init(ks[6], (D, D), D),                     # bias-free projection
        "w_out": init(ks[7], (D, D), D), "b_out": init(ks[8], (D,), D),
        "u_bias": init(ks[9], (H, D // H), D),
        "v_bias": init(ks[10], (H, D // H), D),
    }

    query = jax.random.normal(ks[11], (B, T, D), jnp.float32)
    key_in = jax.random.normal(ks[12], (B, T, D), jnp.float32)
    value_in = jax.random.normal(ks[13], (B, T, D), jnp.float32)

    # Cross-attention style call (distinct q/k/v -> separate row-tiled projections).
    out = jax.block_until_ready(mha_rel_pos_forward(params, query, key_in, value_in))
    ref = jax.block_until_ready(reference_forward(params, query, key_in, value_in))
    assert out.shape == (B, T, D), out.shape
    assert jnp.allclose(out, ref, atol=2e-4, rtol=2e-4), float(jnp.max(jnp.abs(out - ref)))

    # Self-attention call (query is key is value -> fused (D, 3D) QKV matmul path).
    out_sa = jax.block_until_ready(mha_rel_pos_forward(params, query, query, query))
    ref_sa = jax.block_until_ready(reference_forward(params, query, query, query))
    assert jnp.allclose(out_sa, ref_sa, atol=2e-4, rtol=2e-4), \
        float(jnp.max(jnp.abs(out_sa - ref_sa)))

    print("KERNEL_OK")
</pallas_src>

<mosaic_0001>
module attributes {stable_mosaic.version = 11 : i64} {
  func.func @_linear_kernel(%arg0: i32, %arg1: memref<8x32xf32, #tpu.memory_space<vmem>>, %arg2: memref<32x32xf32, #tpu.memory_space<vmem>>, %arg3: memref<1x32xf32, #tpu.memory_space<vmem>>, %arg4: memref<8x32xf32, #tpu.memory_space<vmem>>) attributes {dimension_semantics = [#tpu.dimension_semantics<parallel>], iteration_bounds = array<i64: 1>, scalar_prefetch = 0 : i64, scratch_operands = 0 : i64, tpu.core_type = #tpu.core_type<tc>, window_params = [{transform_indices = @transform_0, window_bounds = array<i64: 8, 32>}, {pipeline_mode = #tpu.pipeline_mode<synchronous>, transform_indices = @transform_1, window_bounds = array<i64: 32, 32>}, {pipeline_mode = #tpu.pipeline_mode<synchronous>, transform_indices = @transform_2, window_bounds = array<i64: 1, 32>}, {transform_indices = @transform_3, window_bounds = array<i64: 8, 32>}]} {
    %c0 = arith.constant 0 : index
    %c0_0 = arith.constant 0 : index
    %0 = vector.load %arg1[%c0, %c0_0] : memref<8x32xf32, #tpu.memory_space<vmem>>, vector<8x32xf32>
    %c0_1 = arith.constant 0 : index
    %c0_2 = arith.constant 0 : index
    %1 = vector.load %arg2[%c0_1, %c0_2] : memref<32x32xf32, #tpu.memory_space<vmem>>, vector<32x32xf32>
    %cst = arith.constant dense<0.000000e+00> : vector<8x32xf32>
    %2 = tpu.matmul %0, %1, %cst {dimension_numbers = #tpu.dot_dimension_numbers<[1], [0], [0], [1], [0, 0, 1, 1], [], []>} : vector<8x32xf32>, vector<32x32xf32>, vector<8x32xf32> -> vector<8x32xf32>
    %c0_3 = arith.constant 0 : index
    %c0_4 = arith.constant 0 : index
    %3 = vector.load %arg3[%c0_3, %c0_4] : memref<1x32xf32, #tpu.memory_space<vmem>>, vector<1x32xf32>
    %4 = vector.broadcast %3 : vector<1x32xf32> to vector<8x32xf32>
    %5 = arith.addf %2, %4 : vector<8x32xf32>
    %c0_5 = arith.constant 0 : index
    %c0_6 = arith.constant 0 : index
    %6 = vector.load %arg4[%c0_5, %c0_6] : memref<8x32xf32, #tpu.memory_space<vmem>>, vector<8x32xf32>
    tpu.vector_store %arg4[%c0_5, %c0_6], %5 {strides = array<i32>} : memref<8x32xf32, #tpu.memory_space<vmem>>, vector<8x32xf32>,
    return
  }
  func.func @transform_0(%arg0: i32) -> (i32, i32) {
    %c0_i32 = arith.constant 0 : i32
    %c0_i32_0 = arith.constant 0 : i32
    return %arg0, %c0_i32 : i32, i32
  }
  func.func @transform_1(%arg0: i32) -> (i32, i32) {
    %c0_i32 = arith.constant 0 : i32
    %c0_i32_0 = arith.constant 0 : i32
    %c0_i32_1 = arith.constant 0 : i32
    return %c0_i32, %c0_i32_0 : i32, i32
  }
  func.func @transform_2(%arg0: i32) -> (i32, i32) {
    %c0_i32 = arith.constant 0 : i32
    %c0_i32_0 = arith.constant 0 : i32
    %c0_i32_1 = arith.constant 0 : i32
    return %c0_i32, %c0_i32_0 : i32, i32
  }
  func.func @transform_3(%arg0: i32) -> (i32, i32) {
    %c0_i32 = arith.constant 0 : i32
    %c0_i32_0 = arith.constant 0 : i32
    return %arg0, %c0_i32 : i32, i32
  }
}

</mosaic_0001>

<llo_original>
// kernel: tpu_custom_call.1
$region0: #{tpu_custom_call.1}
  #allocation0 [shape = 'u32[]', space=smem, size = 0x4, offset = 0x4, fixed_abs, tag = 'smem constant byte address 0x4 - core index']
  #allocation1 [shape = 'u32[144,128]{1,0:T(1,128)}', space=vmem, size = 0x12000, scoped, tag = 'internal scratch']
  %s0 = inlined_call_operand.hbm [shape: f32[8,32], index: 0, kind: input, shape index: {}]
  %s1 = inlined_call_operand.hbm [shape: f32[32,32], index: 1, kind: input, shape index: {}]
  %s2 = inlined_call_operand.vmem [shape: f32[1,32], index: 2, kind: input, shape index: {}]
  %s3 = inlined_call_operand.hbm [shape: f32[8,32], index: 3, kind: output, shape index: {}]
  %s4 = sld [smem:[#allocation0]]
  $region30: #{tpu_custom_call.1} parent=0
    _
  %s6 = ssub.s32 1, %s4
  %s7 = scalar_select 0, %s6, %s4
  $region1: #{tpu_custom_call.1} parent=0
    #allocation2 [shape = 'u8[4096]{0}', space=vmem, size = 0x1000, scoped, tag = 'input window, operand 0, single buffered']
    #allocation3 [shape = 's32[1]{0}', space=sflag, size = 0x4, scoped, tag = 'scoped memory for tpu_custom_call.1']
    #allocation4 [shape = 's32[1]{0}', space=sflag, size = 0x4, scoped, tag = 'scoped memory for tpu_custom_call.1']
    #allocation5 [shape = 'u8[16384]{0}', space=vmem, size = 0x4000, scoped, tag = 'input window, operand 1, single buffered']
    #allocation6 [shape = 's32[1]{0}', space=sflag, size = 0x4, scoped, tag = 'scoped memory for tpu_custom_call.1']
    #allocation7 [shape = 'u8[4096]{0}', space=vmem, size = 0x1000, scoped, tag = 'output window, operand 0, single buffered']
    %8 = vsyncpa [#allocation3], 0
    %9 = vsyncpa [#allocation6], 0
    %10 = vsyncpa [#allocation4], 0
    // Predicated region
    $region2: #{tpu_custom_call.1} parent=1 // pred_check
      _
    $region3: #{tpu_custom_call.1} parent=1 // pred_check_branch
      %12 = sbr.rel (0) target = $region5
    $region4: #{tpu_custom_call.1} parent=1 // pred_region
      %s14 = ssub.s32 128, 128
      %15 = vsyncadd [#allocation3], %s14
      %s17 = sshll.u32 [#allocation2], 4
      %s18 = int_to_ptr.vmem [resolvable:$true] %s17
      %20 = dma.hbm_to_vmem [thread:$0]  %s0, 128, %s18, [#allocation3]
    $region5: #{tpu_custom_call.1} parent=1 // pred_fallthru
      _
    // Predicated region
    $region6: #{tpu_custom_call.1} parent=1 // pred_check
      _
    $region7: #{tpu_custom_call.1} parent=1 // pred_check_branch
      %22 = sbr.rel (0) target = $region9
    $region8: #{tpu_custom_call.1} parent=1 // pred_region
      %s24 = ssub.s32 512, 512
      %25 = vsyncadd [#allocation6], %s24
      %s26 = sshll.u32 [#allocation5], 4
      %s27 = int_to_ptr.vmem [resolvable:$true] %s26
      %32 = dma.hbm_to_vmem [thread:$0]  %s1, 512, %s27, [#allocation6], 128, 128, 8
    $region9: #{tpu_custom_call.1} parent=1 // pred_fallthru
      _
    // Predicated region
    $region10: #{tpu_custom_call.1} parent=1 // pred_check
      _
    $region11: #{tpu_custom_call.1} parent=1 // pred_check_branch
      %34 = sbr.rel (0) target = $region13
    $region12: #{tpu_custom_call.1} parent=1 // pred_region
      _
    $region13: #{tpu_custom_call.1} parent=1 // pred_fallthru
      _
    // Predicated region
    $region14: #{tpu_custom_call.1} parent=1 // pred_check
      _
    $region15: #{tpu_custom_call.1} parent=1 // pred_check_branch
      %36 = sbr.rel (0) target = $region17
    $region16: #{tpu_custom_call.1} parent=1 // pred_region
      %37 = dma.done [#allocation3], 128
    $region17: #{tpu_custom_call.1} parent=1 // pred_fallthru
      _
    // Predicated region
    $region18: #{tpu_custom_call.1} parent=1 // pred_check
      _
    $region19: #{tpu_custom_call.1} parent=1 // pred_check_branch
      %39 = sbr.rel (0) target = $region21
    $region20: #{tpu_custom_call.1} parent=1 // pred_region
      %40 = dma.done [#allocation6], 512
    $region21: #{tpu_custom_call.1} parent=1 // pred_fallthru
      _
    %v41 = vld [vmem:[#allocation2] sm:$0xff]
    %v42 = vld [vmem:[#allocation5] sm:$0xff]
    %v43 = vld [vmem:[#allocation5 + $0x8] sm:$0xff]
    %v44 = vld [vmem:[#allocation5 + $0x10] sm:$0xff]
    %v45 = vld [vmem:[#allocation5 + $0x18] sm:$0xff]
    %v46 = vld [vmem:[%s2] sm:$0x1]
    %v48 = vlaneseq
    %v49 = vshrl.u32 %v48, 7
    %v50 = vsub.s32 0, %v49
    %v51 = vrot.slane %v46, %v50
    %vm53 = vcmask 261120
    %v55 = vsel %vm53, %v41, 0
    %57 = vmatprep.subr.mxu0 0.0
    %58 = vmatpush1.msra.mxu0 0.0
    %59 = vmatprep.subr.mxu0 0.0
    %60 = vmatpush1.msra.mxu0 0.0
    %61 = vmatprep.subr.mxu0 0.0
    %62 = vmatpush1.msra.mxu0 0.0
    %63 = vmatprep.subr.mxu0 0.0
    %64 = vmatpush1.msra.mxu0 0.0
    %65 = vmatprep.subr.mxu0 0.0
    %66 = vmatpush1.msra.mxu0 0.0
    %67 = vmatprep.subr.mxu0 0.0
    %68 = vmatpush1.msra.mxu0 0.0
    %69 = vmatprep.subr.mxu0 0.0
    %70 = vmatpush1.msra.mxu0 0.0
    %71 = vmatprep.subr.mxu0 0.0
    %72 = vmatpush1.msra.mxu0 0.0
    %73 = vmatprep.subr.mxu0 0.0
    %74 = vmatpush1.msra.mxu0 0.0
    %75 = vmatprep.subr.mxu0 0.0
    %76 = vmatpush1.msra.mxu0 0.0
    %77 = vmatprep.subr.mxu0 0.0
    %78 = vmatpush1.msra.mxu0 0.0
    %79 = vmatprep.subr.mxu0 0.0
    %80 = vmatpush1.msra.mxu0 0.0
    %81 = vmatprep.subr.mxu0 0.0
    %82 = vmatpush1.msra.mxu0 %v45
    %83 = vmatprep.subr.mxu0 0.0
    %84 = vmatpush1.msra.mxu0 %v44
    %85 = vmatprep.subr.mxu0 0.0
    %86 = vmatpush1.msra.mxu0 %v43
    %87 = vmatprep.subr.mxu0 0.0
    %88 = vmatpush1.msra.mxu0 %v42
    %89 = vmatprep.subr.mxu0 0.0
    %90 = vmatpush2.msra.mxu0 0.0
    %91 = vmatprep.subr.mxu0 0.0
    %92 = vmatpush2.msra.mxu0 0.0
    %93 = vmatprep.subr.mxu0 0.0
    %94 = vmatpush2.msra.mxu0 0.0
    %95 = vmatprep.subr.mxu0 0.0
    %96 = vmatpush2.msra.mxu0 0.0
    %97 = vmatprep.subr.mxu0 0.0
    %98 = vmatpush2.msra.mxu0 0.0
    %99 = vmatprep.subr.mxu0 0.0
    %100 = vmatpush2.msra.mxu0 0.0
    %101 = vmatprep.subr.mxu0 0.0
    %102 = vmatpush2.msra.mxu0 0.0
    %103 = vmatprep.subr.mxu0 0.0
    %104 = vmatpush2.msra.mxu0 0.0
    %105 = vmatprep.subr.mxu0 0.0
    %106 = vmatpush2.msra.mxu0 0.0
    %107 = vmatprep.subr.mxu0 0.0
    %108 = vmatpush2.msra.mxu0 0.0
    %109 = vmatprep.subr.mxu0 0.0
    %110 = vmatpush2.msra.mxu0 0.0
    %111 = vmatprep.subr.mxu0 0.0
    %112 = vmatpush2.msra.mxu0 0.0
    %113 = vmatprep.subr.mxu0 0.0
    %114 = vmatpush2.msra.mxu0 0.0
    %115 = vmatprep.subr.mxu0 0.0
    %116 = vmatpush2.msra.mxu0 0.0
    %117 = vmatprep.subr.mxu0 0.0
    %118 = vmatpush2.msra.mxu0 0.0
    %119 = vmatprep.subr.mxu0 0.0
    %120 = vmatpush2.msra.mxu0 0.0
    %121 = vmatprep.mubr.f32.mxu0 0.0
    %122 = vmatmul.mubr.f32.gmra.mxu0 %v55
    %v123 = vpop.f32.mrf.mxu0
    %v124 = vadd.f32 %v51, %v123
    %v125 = vpop.f32.mrf.mxu0
    %126 = vdwg.mxu0
    %127 = vst.msk [vmem:[#allocation7] sm:$0xff] %vm53, %v124
    // Predicated region
    $region22: #{tpu_custom_call.1} parent=1 // pred_check
      _
    $region23: #{tpu_custom_call.1} parent=1 // pred_check_branch
      %129 = sbr.rel (0) target = $region25
    $region24: #{tpu_custom_call.1} parent=1 // pred_region
      %s131 = ssub.s32 128, 128
      %132 = vsyncadd [#allocation4], %s131
      %s134 = sshll.u32 [#allocation7], 4
      %s135 = int_to_ptr.vmem [resolvable:$true] %s134
      %137 = dma.vmem_to_hbm [thread:$0]  %s135, 128, %s3, [#allocation4]
    $region25: #{tpu_custom_call.1} parent=1 // pred_fallthru
      _
    // Predicated region
    $region26: #{tpu_custom_call.1} parent=1 // pred_check
      _
    $region27: #{tpu_custom_call.1} parent=1 // pred_check_branch
      %139 = sbr.rel (0) target = $region29
    $region28: #{tpu_custom_call.1} parent=1 // pred_region
      %140 = dma.done [#allocation4], 128
    $region29: #{tpu_custom_call.1} parent=1 // pred_fallthru
      _
    %141 = vsyncpa [#allocation3], 1
    %142 = vsyncpa [#allocation6], 1
    %143 = vsyncpa [#allocation4], 1

</llo_original>
